<compile_context>
chip_gen: v6e
topology: v6e:2x2x1
jax: 0.10.0
libtpu: 0.0.40
codegen_flags: <defaults>
</compile_context>

<pallas_src>
import itertools
from collections import Counter

import jax
import jax.numpy as jnp
from jax.experimental import pallas as pl
from jax.experimental.pallas import tpu as pltpu

# ---- vocab construction (mirrors the PyTorch script) -------------------------------------
corpus = ['I like deep learning', 'I like NLP', 'I enjoy flying',
          'deep learning is amazing', 'NLP is a field of AI', 'I like AI']
words = list(itertools.chain(*[s.lower().split() for s in corpus]))
vocab = Counter(words)
VOCAB_SIZE = len(vocab)          # 13
EMBEDDING_DIM = 32


# ---- Pallas kernel ------------------------------------------------------------------------
def glove_kernel(widx_ref, cidx_ref,      # scalar prefetch (SMEM): (B_pad,) int32 each
                 cooc_ref,                # (Bt, 1) f32 VMEM block
                 wtab_hbm, ctab_hbm,      # (V, D+2) f32, HBM-resident (pl.ANY)
                 loss_ref,                # (Bt, 1) f32 VMEM block: per-pair squared residual
                 w_rows, c_rows,          # VMEM scratch (Bt, D+2) f32
                 sems):                   # DMA semaphores, shape (2,): [word, ctx]
    i = pl.program_id(0)
    bt = cooc_ref.shape[0]
    base = i * bt

    # ---- batched DMA row gather: issue all 2*Bt row copies back-to-back, then drain -------
    @pl.loop(0, bt)
    def _issue(b):
        wi = widx_ref[base + b]
        ci = cidx_ref[base + b]
        pltpu.make_async_copy(wtab_hbm.at[pl.ds(wi, 1)], w_rows.at[pl.ds(b, 1)],
                              sems.at[0]).start()
        pltpu.make_async_copy(ctab_hbm.at[pl.ds(ci, 1)], c_rows.at[pl.ds(b, 1)],
                              sems.at[1]).start()

    @pl.loop(0, bt)
    def _drain(b):
        # Same-shape descriptors as the issued copies (byte counts match), shared semaphore.
        pltpu.make_async_copy(wtab_hbm.at[pl.ds(0, 1)], w_rows.at[pl.ds(b, 1)],
                              sems.at[0]).wait()
        pltpu.make_async_copy(ctab_hbm.at[pl.ds(0, 1)], c_rows.at[pl.ds(b, 1)],
                              sems.at[1]).wait()

    # ---- per-pair math: dot + word_bias + ctx_bias in one reduce (biases folded in tables)
    prod = w_rows[...] * c_rows[...]                          # (Bt, D+2)   VPU
    dot_plus_bias = jnp.sum(prod, axis=1, keepdims=True)      # (Bt, 1)     XLU lane-reduce
    residual = dot_plus_bias - jnp.log(cooc_ref[...] + 1e-10)  # (Bt, 1)    EUP log
    loss_ref[...] = residual * residual                       # per-pair squared residual


# ---- persistent augmented-table layout (built ONCE, outside the per-call path) ------------
def build_augmented_tables(word_embeddings, context_embeddings, word_bias, context_bias):
    """[wemb | wbias | 1] and [cemb | 1 | cbias], shape (V, D+2). Store these as the
    persistent parameter layout so the forward pass does no per-call concat/relayout."""
    V, _ = word_embeddings.shape
    ones = jnp.ones((V, 1), jnp.float32)
    wtab = jnp.concatenate([word_embeddings.astype(jnp.float32),
                            word_bias.reshape(V, 1).astype(jnp.float32), ones], axis=1)
    ctab = jnp.concatenate([context_embeddings.astype(jnp.float32),
                            ones, context_bias.reshape(V, 1).astype(jnp.float32)], axis=1)
    return wtab, ctab


# ---- forward on the persisted augmented tables --------------------------------------------
def glove_forward_aug(word_idx, context_idx, cooc_value, wtab_aug, ctab_aug, *, bt=128):
    """Scalar mean GloVe loss (matches the PyTorch module forward)."""
    B = word_idx.shape[0]
    V, Daug = wtab_aug.shape
    n_tiles = -(-B // bt)
    B_pad = n_tiles * bt

    # indices clipped (guards the HBM row DMA against out-of-range values), padded with 0;
    # padded co-occurrences set to 1.0 (log ~ 0, finite); padded lanes masked out below.
    widx = jnp.pad(jnp.clip(word_idx.astype(jnp.int32), 0, V - 1), (0, B_pad - B))
    cidx = jnp.pad(jnp.clip(context_idx.astype(jnp.int32), 0, V - 1), (0, B_pad - B))
    cooc = jnp.pad(cooc_value.astype(jnp.float32), (0, B_pad - B),
                   constant_values=1.0).reshape(B_pad, 1)

    grid_spec = pltpu.PrefetchScalarGridSpec(
        num_scalar_prefetch=2,                       # widx, cidx -> SMEM
        grid=(n_tiles,),
        in_specs=[
            pl.BlockSpec((bt, 1), lambda i, widx, cidx: (i, 0)),   # cooc tile
            pl.BlockSpec(memory_space=pl.ANY),                     # word table, HBM
            pl.BlockSpec(memory_space=pl.ANY),                     # context table, HBM
        ],
        out_specs=pl.BlockSpec((bt, 1), lambda i, widx, cidx: (i, 0)),
        scratch_shapes=[
            pltpu.VMEM((bt, Daug), jnp.float32),     # gathered word rows
            pltpu.VMEM((bt, Daug), jnp.float32),     # gathered context rows
            pltpu.SemaphoreType.DMA((2,)),
        ],
    )

    row_bytes = Daug * 4
    cost = pl.CostEstimate(
        flops=2 * B_pad * Daug + 4 * B_pad,
        transcendentals=B_pad,
        bytes_accessed=2 * B_pad * row_bytes + 2 * B_pad * 4 + 2 * B_pad * 4,
    )

    loss_pairs = pl.pallas_call(
        glove_kernel,
        grid_spec=grid_spec,
        out_shape=jax.ShapeDtypeStruct((B_pad, 1), jnp.float32),
        compiler_params=pltpu.CompilerParams(
            dimension_semantics=("parallel",),        # megacore-shardable batch axis (v7x)
            vmem_limit_bytes=16 * 1024 * 1024,        # explicit, with large headroom
        ),
        cost_estimate=cost,
    )(widx, cidx, cooc, wtab_aug, ctab_aug)

    # masked mean with the TRUE batch size (padded lanes excluded)
    mask = (jnp.arange(B_pad) < B).astype(jnp.float32)
    return jnp.sum(loss_pairs[:, 0] * mask) / B


# ---- convenience wrapper with the original module signature (tables built per call) -------
def glove_forward(word_idx, context_idx, cooc_value,
                  word_embeddings, context_embeddings, word_bias, context_bias):
    # NOTE: prefer persisting the augmented tables (build_augmented_tables) across steps.
    wtab_aug, ctab_aug = build_augmented_tables(
        word_embeddings, context_embeddings, word_bias, context_bias)
    return glove_forward_aug(word_idx, context_idx, cooc_value, wtab_aug, ctab_aug)


# ---- deterministic parameter init (mirrors nn.init.xavier_uniform_ / zeros_) --------------
def init_params(key, vocab_size, embedding_dim):
    k_w, k_c = jax.random.split(key)
    bound = (6.0 / (vocab_size + embedding_dim)) ** 0.5   # xavier_uniform bound
    word_embeddings = jax.random.uniform(
        k_w, (vocab_size, embedding_dim), jnp.float32, -bound, bound)
    context_embeddings = jax.random.uniform(
        k_c, (vocab_size, embedding_dim), jnp.float32, -bound, bound)
    word_bias = jnp.zeros((vocab_size, 1), jnp.float32)
    context_bias = jnp.zeros((vocab_size, 1), jnp.float32)
    return word_embeddings, context_embeddings, word_bias, context_bias


if __name__ == "__main__":
    key = jax.random.PRNGKey(0)
    k_params, k_w, k_c, k_x, k_b1, k_b2 = jax.random.split(key, 6)

    word_embeddings, context_embeddings, word_bias, context_bias = init_params(
        k_params, VOCAB_SIZE, EMBEDDING_DIM)
    # perturb biases so the bias-folding path is actually exercised in the check
    word_bias = word_bias + 0.1 * jax.random.normal(k_b1, word_bias.shape)
    context_bias = context_bias + 0.1 * jax.random.normal(k_b2, context_bias.shape)

    # persistent augmented-table layout, built once
    wtab_aug, ctab_aug = build_augmented_tables(
        word_embeddings, context_embeddings, word_bias, context_bias)

    B = 8
    word_idx = jax.random.randint(k_w, (B,), 0, VOCAB_SIZE, dtype=jnp.int32)
    context_idx = jax.random.randint(k_c, (B,), 0, VOCAB_SIZE, dtype=jnp.int32)
    cooc_value = jax.random.uniform(k_x, (B,), jnp.float32, 1.0, 10.0)

    loss = jax.jit(glove_forward_aug)(word_idx, context_idx, cooc_value, wtab_aug, ctab_aug)
    loss = jax.block_until_ready(loss)

    # pure-JAX reference check (mirrors the PyTorch forward)
    we = word_embeddings[word_idx]
    ce = context_embeddings[context_idx]
    wb = word_bias[word_idx].squeeze()
    cb = context_bias[context_idx].squeeze()
    dot = jnp.sum(we * ce, axis=1)
    ref = jnp.mean((dot + wb + cb - jnp.log(cooc_value + 1e-10)) ** 2)
    assert jnp.allclose(loss, ref, rtol=1e-5, atol=1e-5), (loss, ref)

    print("KERNEL_OK")
</pallas_src>

<mosaic_0001>
module attributes {stable_mosaic.version = 11 : i64} {
  func.func @glove_kernel(%arg0: i32, %arg1: memref<128xi32, #tpu.memory_space<smem>>, %arg2: memref<128xi32, #tpu.memory_space<smem>>, %arg3: memref<128x1xf32, #tpu.memory_space<vmem>>, %arg4: memref<13x34xf32, #tpu.memory_space<any>>, %arg5: memref<13x34xf32, #tpu.memory_space<any>>, %arg6: memref<128x1xf32, #tpu.memory_space<vmem>>, %arg7: memref<128x34xf32, #tpu.memory_space<vmem>>, %arg8: memref<128x34xf32, #tpu.memory_space<vmem>>, %arg9: memref<2x!tpu.dma_semaphore, #tpu.memory_space<semaphore_mem>>) attributes {dimension_semantics = [#tpu.dimension_semantics<parallel>], iteration_bounds = array<i64: 1>, scalar_prefetch = 2 : i64, scratch_operands = 3 : i64, tpu.core_type = #tpu.core_type<tc>, window_params = [{transform_indices = @transform_0, window_bounds = array<i64: 128, 1>}, {}, {}, {transform_indices = @transform_3, window_bounds = array<i64: 128, 1>}]} {
    %c128_i32 = arith.constant 128 : i32
    %0 = arith.muli %arg0, %c128_i32 : i32
    %c0_i32 = arith.constant 0 : i32
    %c128_i32_0 = arith.constant 128 : i32
    %1 = arith.addi %c0_i32, %c128_i32_0 : i32
    %c1_i32 = arith.constant 1 : i32
    scf.for %arg10 = %c0_i32 to %1 step %c1_i32  : i32 {
      %c1_i32_14 = arith.constant 1 : i32
      %15 = arith.muli %arg10, %c1_i32_14 : i32
      %c0_i32_15 = arith.constant 0 : i32
      %16 = arith.addi %c0_i32_15, %15 : i32
      %17 = arith.addi %0, %16 : i32
      %18 = arith.index_cast %17 : i32 to index
      %19 = memref.load %arg1[%18] : memref<128xi32, #tpu.memory_space<smem>>
      %20 = arith.addi %0, %16 : i32
      %21 = arith.index_cast %20 : i32 to index
      %22 = memref.load %arg2[%21] : memref<128xi32, #tpu.memory_space<smem>>
      %c0_i32_16 = arith.constant 0 : i32
      %c0_i32_17 = arith.constant 0 : i32
      %23 = tpu.memref_slice %arg4[%19, %c0_i32_17] : memref<13x34xf32, #tpu.memory_space<any>> -> memref<1x34xf32, #tpu.memory_space<any>>
      %c0_i32_18 = arith.constant 0 : i32
      %24 = tpu.memref_slice %arg7[%16, %c0_i32_18] : memref<128x34xf32, #tpu.memory_space<vmem>> -> memref<1x34xf32, #tpu.memory_space<vmem>>
      %25 = tpu.memref_slice %arg9[%c0_i32_16] : memref<2x!tpu.dma_semaphore, #tpu.memory_space<semaphore_mem>> -> memref<1x!tpu.dma_semaphore, #tpu.memory_space<semaphore_mem>>
      %26 = tpu.memref_squeeze %25 : memref<1x!tpu.dma_semaphore, #tpu.memory_space<semaphore_mem>> -> memref<!tpu.dma_semaphore, #tpu.memory_space<semaphore_mem>>
      tpu.enqueue_dma source(%23 : memref<1x34xf32, #tpu.memory_space<any>>) target(%24 : memref<1x34xf32, #tpu.memory_space<vmem>>) target_semaphore(%26 : memref<!tpu.dma_semaphore, #tpu.memory_space<semaphore_mem>>)
      %c1_i32_19 = arith.constant 1 : i32
      %c0_i32_20 = arith.constant 0 : i32
      %27 = tpu.memref_slice %arg5[%22, %c0_i32_20] : memref<13x34xf32, #tpu.memory_space<any>> -> memref<1x34xf32, #tpu.memory_space<any>>
      %c0_i32_21 = arith.constant 0 : i32
      %28 = tpu.memref_slice %arg8[%16, %c0_i32_21] : memref<128x34xf32, #tpu.memory_space<vmem>> -> memref<1x34xf32, #tpu.memory_space<vmem>>
      %29 = tpu.memref_slice %arg9[%c1_i32_19] : memref<2x!tpu.dma_semaphore, #tpu.memory_space<semaphore_mem>> -> memref<1x!tpu.dma_semaphore, #tpu.memory_space<semaphore_mem>>
      %30 = tpu.memref_squeeze %29 : memref<1x!tpu.dma_semaphore, #tpu.memory_space<semaphore_mem>> -> memref<!tpu.dma_semaphore, #tpu.memory_space<semaphore_mem>>
      tpu.enqueue_dma source(%27 : memref<1x34xf32, #tpu.memory_space<any>>) target(%28 : memref<1x34xf32, #tpu.memory_space<vmem>>) target_semaphore(%30 : memref<!tpu.dma_semaphore, #tpu.memory_space<semaphore_mem>>)
    }
    %c128_i32_1 = arith.constant 128 : i32
    %c0_i32_2 = arith.constant 0 : i32
    %c128_i32_3 = arith.constant 128 : i32
    %2 = arith.addi %c0_i32_2, %c128_i32_3 : i32
    %c1_i32_4 = arith.constant 1 : i32
    scf.for %arg10 = %c0_i32_2 to %2 step %c1_i32_4  : i32 {
      %c1_i32_14 = arith.constant 1 : i32
      %15 = arith.muli %arg10, %c1_i32_14 : i32
      %c0_i32_15 = arith.constant 0 : i32
      %16 = arith.addi %c0_i32_15, %15 : i32
      %c0_i32_16 = arith.constant 0 : i32
      %c0_i32_17 = arith.constant 0 : i32
      %c0_i32_18 = arith.constant 0 : i32
      %17 = tpu.memref_slice %arg4[%c0_i32_17, %c0_i32_18] : memref<13x34xf32, #tpu.memory_space<any>> -> memref<1x34xf32, #tpu.memory_space<any>>
      %c0_i32_19 = arith.constant 0 : i32
      %18 = tpu.memref_slice %arg7[%16, %c0_i32_19] : memref<128x34xf32, #tpu.memory_space<vmem>> -> memref<1x34xf32, #tpu.memory_space<vmem>>
      %19 = tpu.memref_slice %arg9[%c0_i32_16] : memref<2x!tpu.dma_semaphore, #tpu.memory_space<semaphore_mem>> -> memref<1x!tpu.dma_semaphore, #tpu.memory_space<semaphore_mem>>
      %20 = tpu.memref_squeeze %19 : memref<1x!tpu.dma_semaphore, #tpu.memory_space<semaphore_mem>> -> memref<!tpu.dma_semaphore, #tpu.memory_space<semaphore_mem>>
      tpu.wait_dma2 semaphore(%20 : memref<!tpu.dma_semaphore, #tpu.memory_space<semaphore_mem>>) src(%17 : memref<1x34xf32, #tpu.memory_space<any>>) dst(%18 : memref<1x34xf32, #tpu.memory_space<vmem>>)
      %c1_i32_20 = arith.constant 1 : i32
      %c0_i32_21 = arith.constant 0 : i32
      %c0_i32_22 = arith.constant 0 : i32
      %21 = tpu.memref_slice %arg5[%c0_i32_21, %c0_i32_22] : memref<13x34xf32, #tpu.memory_space<any>> -> memref<1x34xf32, #tpu.memory_space<any>>
      %c0_i32_23 = arith.constant 0 : i32
      %22 = tpu.memref_slice %arg8[%16, %c0_i32_23] : memref<128x34xf32, #tpu.memory_space<vmem>> -> memref<1x34xf32, #tpu.memory_space<vmem>>
      %23 = tpu.memref_slice %arg9[%c1_i32_20] : memref<2x!tpu.dma_semaphore, #tpu.memory_space<semaphore_mem>> -> memref<1x!tpu.dma_semaphore, #tpu.memory_space<semaphore_mem>>
      %24 = tpu.memref_squeeze %23 : memref<1x!tpu.dma_semaphore, #tpu.memory_space<semaphore_mem>> -> memref<!tpu.dma_semaphore, #tpu.memory_space<semaphore_mem>>
      tpu.wait_dma2 semaphore(%24 : memref<!tpu.dma_semaphore, #tpu.memory_space<semaphore_mem>>) src(%21 : memref<1x34xf32, #tpu.memory_space<any>>) dst(%22 : memref<1x34xf32, #tpu.memory_space<vmem>>)
    }
    %c128_i32_5 = arith.constant 128 : i32
    %c0 = arith.constant 0 : index
    %c0_6 = arith.constant 0 : index
    %3 = vector.load %arg7[%c0, %c0_6] : memref<128x34xf32, #tpu.memory_space<vmem>>, vector<128x34xf32>
    %c0_7 = arith.constant 0 : index
    %c0_8 = arith.constant 0 : index
    %4 = vector.load %arg8[%c0_7, %c0_8] : memref<128x34xf32, #tpu.memory_space<vmem>>, vector<128x34xf32>
    %5 = arith.mulf %3, %4 : vector<128x34xf32>
    %cst = arith.constant dense<0.000000e+00> : vector<128xf32>
    %6 = vector.multi_reduction <add>, %5, %cst [1] : vector<128x34xf32> to vector<128xf32>
    %7 = vector.shape_cast %6 : vector<128xf32> to vector<128x1xf32>
    %c0_9 = arith.constant 0 : index
    %c0_10 = arith.constant 0 : index
    %8 = vector.load %arg3[%c0_9, %c0_10] : memref<128x1xf32, #tpu.memory_space<vmem>>, vector<128x1xf32>
    %cst_11 = arith.constant 1.000000e-10 : f32
    %9 = vector.broadcast %cst_11 : f32 to vector<128x1xf32>
    %10 = arith.addf %8, %9 : vector<128x1xf32>
    %11 = math.log %10 : vector<128x1xf32>
    %12 = arith.subf %7, %11 : vector<128x1xf32>
    %13 = arith.mulf %12, %12 : vector<128x1xf32>
    %c0_12 = arith.constant 0 : index
    %c0_13 = arith.constant 0 : index
    %14 = vector.load %arg6[%c0_12, %c0_13] : memref<128x1xf32, #tpu.memory_space<vmem>>, vector<128x1xf32>
    tpu.vector_store %arg6[%c0_12, %c0_13], %13 {strides = array<i32>} : memref<128x1xf32, #tpu.memory_space<vmem>>, vector<128x1xf32>,
    return
  }
  func.func @transform_0(%arg0: i32, %arg1: memref<128xi32, #tpu.memory_space<smem>>, %arg2: memref<128xi32, #tpu.memory_space<smem>>) -> (i32, i32) {
    %c0_i32 = arith.constant 0 : i32
    %c0_i32_0 = arith.constant 0 : i32
    return %arg0, %c0_i32 : i32, i32
  }
  func.func @transform_3(%arg0: i32, %arg1: memref<128xi32, #tpu.memory_space<smem>>, %arg2: memref<128xi32, #tpu.memory_space<smem>>) -> (i32, i32) {
    %c0_i32 = arith.constant 0 : i32
    %c0_i32_0 = arith.constant 0 : i32
    return %arg0, %c0_i32 : i32, i32
  }
}

</mosaic_0001>

<llo_original>
// kernel: glove_forward_aug.1
$region0: #{glove_forward_aug.1}
  #allocation0 [shape = 'u32[]', space=smem, size = 0x4, offset = 0x4, fixed_abs, tag = 'smem constant byte address 0x4 - core index']
  #allocation1 [shape = 'u32[144,128]{1,0:T(1,128)}', space=vmem, size = 0x12000, scoped, tag = 'internal scratch']
  #allocation2 [shape = 'f32[128,34]{1,0:T(8,128)}', space=vmem, size = 0x10000, scoped, tag = 'scratch operand']
  #allocation3 [shape = 'f32[128,34]{1,0:T(8,128)}', space=vmem, size = 0x10000, scoped, tag = 'scratch operand']
  #allocation4 [shape = 's32[2]{0}', space=sflag, size = 0x8, scoped, tag = 'scratch operand']
  #allocation5 [shape = 's32[1]{0}', space=sflag, size = 0x4, scoped, tag = 'scoped memory for glove_forward_aug.1']
  #allocation6 [shape = 'u8[512]{0}', space=smem, size = 0x200, scoped, tag = 'prefetched SMEM operand 0']
  #allocation7 [shape = 'u8[512]{0}', space=smem, size = 0x200, scoped, tag = 'prefetched SMEM operand 1']
  #allocation8 [shape = 's32[]', space=sflag, size = 0x4, offset = 0, fixed_abs, tag = 'sflag constant byte address 0x0 - dummy sync flag']
  #allocation9 [shape = 's32[]', space=sflag, size = 0x4, offset = 0, fixed_abs, tag = 'sflag constant byte address 0x0 - dummy sync flag']
  %s0 = inlined_call_operand.vmem [shape: s32[128], index: 0, kind: input, shape index: {}]
  %s1 = inlined_call_operand.vmem [shape: s32[128], index: 1, kind: input, shape index: {}]
  %s2 = inlined_call_operand.vmem [shape: f32[128,1], index: 2, kind: input, shape index: {}]
  %s3 = inlined_call_operand.vmem [shape: f32[13,34], index: 3, kind: input, shape index: {}]
  %s4 = inlined_call_operand.vmem [shape: f32[13,34], index: 4, kind: input, shape index: {}]
  %s5 = inlined_call_operand.vmem [shape: f32[128,1], index: 5, kind: output, shape index: {}]
  %s6 = sld [smem:[#allocation0]]
  $region88: #{glove_forward_aug.1} parent=0
    _
  %s8 = ssub.s32 1, %s6
  %s9 = scalar_select 0, %s8, %s6
  %s10 = sshll.u32 %s0, 4
  %s11 = int_to_ptr.vmem [resolvable:$true] %s10
  %13 = dma.vmem_to_smem %s11, 16, [#allocation6], [#allocation5]
  %s14 = sshll.u32 %s1, 4
  %s15 = int_to_ptr.vmem [resolvable:$true] %s14
  %17 = dma.vmem_to_smem %s15, 16, [#allocation7], [#allocation5]
  %18 = dma.done [#allocation5], 32
  %19 = sfence
  // Predicated region
  $region2: #{glove_forward_aug.1} parent=0 // pred_check
    _
  $region3: #{glove_forward_aug.1} parent=0 // pred_check_branch
    %21 = sbr.rel (0) target = $region5
  $region4: #{glove_forward_aug.1} parent=0 // pred_region
    _
  $region5: #{glove_forward_aug.1} parent=0 // pred_fallthru
    _
  %s22 = smul.u32 0, 128
  loop: start=0, step=1, limit=128
  $region6: #{glove_forward_aug.1} parent=0 // loop_pre_header
    _
  $region7: #{glove_forward_aug.1} parent=0 // loop_header
    %s24 = sphi 0, %s28
    %p25 = scmp.ge.s32.totalorder %s24, 128
  $region8: #{glove_forward_aug.1} parent=0 // loop_header_branch
    %27 = sbr.rel (%p25) target = $region12
  $region9: #{glove_forward_aug.1} parent=0 // loop_body
    %s29 = sadd.s32 %s22, %s24
    %s30 = sld [smem:[#allocation6 + %s29]]
    %s31 = sld [smem:[#allocation7 + %s29]]
    %s32 = scalar_lea.vmem %s3, %s30
    %s33 = scalar_lea.vmem [#allocation2], %s24
    %p35 = scmp.lt.u32.totalorder 1, 8
    %p36 = pneg %p35
    // Predicated region
    $region13: #{glove_forward_aug.1} parent=9 // pred_check
      _
    $region14: #{glove_forward_aug.1} parent=9 // pred_check_branch
      %38 = sbr.rel (%p35) target = $region16
    $region15: #{glove_forward_aug.1} parent=9 // pred_region
      %s54 = sand.u32 1, 7
      %p55 = scmp.eq.s32.totalorder %s54, 0
      %p56 = pneg %p55
      // Predicated region
      $region28: #{glove_forward_aug.1} parent=15 // pred_check
        _
      $region29: #{glove_forward_aug.1} parent=15 // pred_check_branch
        %58 = sbr.rel (%p55) target = $region31
      $region30: #{glove_forward_aug.1} parent=15 // pred_region
        %s59 = sand.u32 1, 7
        %s60 = ssub.s32 1, %s59
        %s61 = scalar_lea.vmem %s32, %s60
        %s62 = ssub.s32 1, %s59
        %s63 = scalar_lea.vmem %s33, %s62 [#allocation2]
        %s64 = sshll.u32 1, %s59
        %s65 = ssub.s32 %s64, 1
        loop: start=0, step=1, limit=1
        $region32: #{glove_forward_aug.1} parent=30 // loop_pre_header
          _
        $region33: #{glove_forward_aug.1} parent=30 // loop_header
          %s67 = sphi 0, %s71
          %p68 = scmp.ge.s32.totalorder %s67, 1
          %s72 = sphi %s61, %s61
          %s73 = sphi %s63, %s63
        $region34: #{glove_forward_aug.1} parent=30 // loop_header_branch
          %70 = sbr.rel (%p68) target = $region38
        $region35: #{glove_forward_aug.1} parent=30 // loop_body
          %v74 = vld [vmem:[%s72] sm:%s65]
          %75 = vst [vmem:[%s73] sm:%s65] %v74
        $region36: #{glove_forward_aug.1} parent=30 // loop_footer
          %s71 = sadd.s32 1, %s67
        $region37: #{glove_forward_aug.1} parent=30 // loop_footer_branch
          %66 = sbr.rel target = $region33
        $region38: #{glove_forward_aug.1} parent=30 // loop_exit
          _
      $region31: #{glove_forward_aug.1} parent=15 // pred_fallthru
        _
    $region16: #{glove_forward_aug.1} parent=9 // pred_fallthru
      _
    // Predicated region
    $region17: #{glove_forward_aug.1} parent=9 // pred_check
      %p39 = pneg %p35
    $region18: #{glove_forward_aug.1} parent=9 // pred_check_branch
      %41 = sbr.rel (%p39) target = $region20
    $region19: #{glove_forward_aug.1} parent=9 // pred_region
      %s42 = sshll.u32 1, 1
      %s43 = ssub.s32 %s42, 1
      loop: start=0, step=1, limit=1
      $region21: #{glove_forward_aug.1} parent=19 // loop_pre_header
        _
      $region22: #{glove_forward_aug.1} parent=19 // loop_header
        %s45 = sphi 0, %s49
        %p46 = scmp.ge.s32.totalorder %s45, 1
        %s50 = sphi %s32, %s32
        %s51 = sphi %s33, %s33
      $region23: #{glove_forward_aug.1} parent=19 // loop_header_branch
        %48 = sbr.rel (%p46) target = $region27
      $region24: #{glove_forward_aug.1} parent=19 // loop_body
        %v52 = vld [vmem:[%s50] sm:%s43]
        %53 = vst [vmem:[%s51] sm:%s43] %v52
      $region25: #{glove_forward_aug.1} parent=19 // loop_footer
        %s49 = sadd.s32 1, %s45
      $region26: #{glove_forward_aug.1} parent=19 // loop_footer_branch
        %44 = sbr.rel target = $region22
      $region27: #{glove_forward_aug.1} parent=19 // loop_exit
        _
    $region20: #{glove_forward_aug.1} parent=9 // pred_fallthru
      _
    // Predicated region
    $region39: #{glove_forward_aug.1} parent=9 // pred_check
      _
    $region40: #{glove_forward_aug.1} parent=9 // pred_check_branch
      %78 = sbr.rel (0) target = $region42
    $region41: #{glove_forward_aug.1} parent=9 // pred_region
      %79 = vsyncadd [#allocation4], 16
    $region42: #{glove_forward_aug.1} parent=9 // pred_fallthru
      _
    %s80 = scalar_lea.vmem %s4, %s31
    %s81 = scalar_lea.vmem [#allocation3], %s24
    %s82 = scalar_lea.sflag [#allocation4], 1
    %p84 = scmp.lt.u32.totalorder 1, 8
    %p85 = pneg %p84
    // Predicated region
    $region43: #{glove_forward_aug.1} parent=9 // pred_check
      _
    $region44: #{glove_forward_aug.1} parent=9 // pred_check_branch
      %87 = sbr.rel (%p84) target = $region46
    $region45: #{glove_forward_aug.1} parent=9 // pred_region
      %s103 = sand.u32 1, 7
      %p104 = scmp.eq.s32.totalorder %s103, 0
      %p105 = pneg %p104
      // Predicated region
      $region58: #{glove_forward_aug.1} parent=45 // pred_check
        _
      $region59: #{glove_forward_aug.1} parent=45 // pred_check_branch
        %107 = sbr.rel (%p104) target = $region61
      $region60: #{glove_forward_aug.1} parent=45 // pred_region
        %s108 = sand.u32 1, 7
        %s109 = ssub.s32 1, %s108
        %s110 = scalar_lea.vmem %s80, %s109
        %s111 = ssub.s32 1, %s108
        %s112 = scalar_lea.vmem %s81, %s111 [#allocation3]
        %s113 = sshll.u32 1, %s108
        %s114 = ssub.s32 %s113, 1
        loop: start=0, step=1, limit=1
        $region62: #{glove_forward_aug.1} parent=60 // loop_pre_header
          _
        $region63: #{glove_forward_aug.1} parent=60 // loop_header
          %s116 = sphi 0, %s120
          %p117 = scmp.ge.s32.totalorder %s116, 1
          %s121 = sphi %s110, %s110
          %s122 = sphi %s112, %s112
        $region64: #{glove_forward_aug.1} parent=60 // loop_header_branch
          %119 = sbr.rel (%p117) target = $region68
        $region65: #{glove_forward_aug.1} parent=60 // loop_body
          %v123 = vld [vmem:[%s121] sm:%s114]
          %124 = vst [vmem:[%s122] sm:%s114] %v123
        $region66: #{glove_forward_aug.1} parent=60 // loop_footer
          %s120 = sadd.s32 1, %s116
        $region67: #{glove_forward_aug.1} parent=60 // loop_footer_branch
          %115 = sbr.rel target = $region63
        $region68: #{glove_forward_aug.1} parent=60 // loop_exit
          _
      $region61: #{glove_forward_aug.1} parent=45 // pred_fallthru
        _
    $region46: #{glove_forward_aug.1} parent=9 // pred_fallthru
      _
    // Predicated region
    $region47: #{glove_forward_aug.1} parent=9 // pred_check
      %p88 = pneg %p84
    $region48: #{glove_forward_aug.1} parent=9 // pred_check_branch
      %90 = sbr.rel (%p88) target = $region50
    $region49: #{glove_forward_aug.1} parent=9 // pred_region
      %s91 = sshll.u32 1, 1
      %s92 = ssub.s32 %s91, 1
      loop: start=0, step=1, limit=1
      $region51: #{glove_forward_aug.1} parent=49 // loop_pre_header
        _
      $region52: #{glove_forward_aug.1} parent=49 // loop_header
        %s94 = sphi 0, %s98
        %p95 = scmp.ge.s32.totalorder %s94, 1
        %s99 = sphi %s80, %s80
        %s100 = sphi %s81, %s81
      $region53: #{glove_forward_aug.1} parent=49 // loop_header_branch
        %97 = sbr.rel (%p95) target = $region57
      $region54: #{glove_forward_aug.1} parent=49 // loop_body
        %v101 = vld [vmem:[%s99] sm:%s92]
        %102 = vst [vmem:[%s100] sm:%s92] %v101
      $region55: #{glove_forward_aug.1} parent=49 // loop_footer
        %s98 = sadd.s32 1, %s94
      $region56: #{glove_forward_aug.1} parent=49 // loop_footer_branch
        %93 = sbr.rel target = $region52
      $region57: #{glove_forward_aug.1} parent=49 // loop_exit
        _
    $region50: #{glove_forward_aug.1} parent=9 // pred_fallthru
      _
    // Predicated region
    $region69: #{glove_forward_aug.1} parent=9 // pred_check
      _
    $region70: #{glove_forward_aug.1} parent=9 // pred_check_branch
      %127 = sbr.rel (0) target = $region72
    $region71: #{glove_forward_aug.1} parent=9 // pred_region
      %128 = vsyncadd %s82, 16
    $region72: #{glove_forward_aug.1} parent=9 // pred_fallthru
      _
  $region10: #{glove_forward_aug.1} parent=0 // loop_footer
    %s28 = sadd.s32 1, %s24
  $region11: #{glove_forward_aug.1} parent=0 // loop_footer_branch
    %23 = sbr.rel target = $region7
  $region12: #{glove_forward_aug.1} parent=0 // loop_exit
    _
  loop: start=0, step=1, limit=128
  $region73: #{glove_forward_aug.1} parent=0 // loop_pre_header
    _
  $region74: #{glove_forward_aug.1} parent=0 // loop_header
    %s130 = sphi 0, %s134
    %p131 = scmp.ge.s32.totalorder %s130, 128
  $region75: #{glove_forward_aug.1} parent=0 // loop_header_branch
    %133 = sbr.rel (%p131) target = $region79
  $region76: #{glove_forward_aug.1} parent=0 // loop_body
    %s135 = smul.u32 1, 1
    %s136 = sshll.u32 %s135, 4
    %137 = dma.done [#allocation4], %s136
    %s138 = scalar_lea.sflag [#allocation4], 1
    %s139 = sshll.u32 %s135, 4
    %140 = dma.done %s138, %s139
  $region77: #{glove_forward_aug.1} parent=0 // loop_footer
    %s134 = sadd.s32 1, %s130
  $region78: #{glove_forward_aug.1} parent=0 // loop_footer_branch
    %129 = sbr.rel target = $region74
  $region79: #{glove_forward_aug.1} parent=0 // loop_exit
    _
  %v141 = vld [vmem:[#allocation2] sm:$0xff]
  %v142 = vld [vmem:[#allocation2 + $0x8] sm:$0xff]
  %v143 = vld [vmem:[#allocation2 + $0x10] sm:$0xff]
  %v144 = vld [vmem:[#allocation2 + $0x18] sm:$0xff]
  %v145 = vld [vmem:[#allocation2 + $0x20] sm:$0xff]
  %v146 = vld [vmem:[#allocation2 + $0x28] sm:$0xff]
  %v147 = vld [vmem:[#allocation2 + $0x30] sm:$0xff]
  %v148 = vld [vmem:[#allocation2 + $0x38] sm:$0xff]
  %v149 = vld [vmem:[#allocation2 + $0x40] sm:$0xff]
  %v150 = vld [vmem:[#allocation2 + $0x48] sm:$0xff]
  %v151 = vld [vmem:[#allocation2 + $0x50] sm:$0xff]
  %v152 = vld [vmem:[#allocation2 + $0x58] sm:$0xff]
  %v153 = vld [vmem:[#allocation2 + $0x60] sm:$0xff]
  %v154 = vld [vmem:[#allocation2 + $0x68] sm:$0xff]
  %v155 = vld [vmem:[#allocation2 + $0x70] sm:$0xff]
  %v156 = vld [vmem:[#allocation2 + $0x78] sm:$0xff]
  %v157 = vld [vmem:[#allocation3] sm:$0xff]
  %v158 = vld [vmem:[#allocation3 + $0x8] sm:$0xff]
  %v159 = vld [vmem:[#allocation3 + $0x10] sm:$0xff]
  %v160 = vld [vmem:[#allocation3 + $0x18] sm:$0xff]
  %v161 = vld [vmem:[#allocation3 + $0x20] sm:$0xff]
  %v162 = vld [vmem:[#allocation3 + $0x28] sm:$0xff]
  %v163 = vld [vmem:[#allocation3 + $0x30] sm:$0xff]
  %v164 = vld [vmem:[#allocation3 + $0x38] sm:$0xff]
  %v165 = vld [vmem:[#allocation3 + $0x40] sm:$0xff]
  %v166 = vld [vmem:[#allocation3 + $0x48] sm:$0xff]
  %v167 = vld [vmem:[#allocation3 + $0x50] sm:$0xff]
  %v168 = vld [vmem:[#allocation3 + $0x58] sm:$0xff]
  %v169 = vld [vmem:[#allocation3 + $0x60] sm:$0xff]
  %v170 = vld [vmem:[#allocation3 + $0x68] sm:$0xff]
  %v171 = vld [vmem:[#allocation3 + $0x70] sm:$0xff]
  %v172 = vld [vmem:[#allocation3 + $0x78] sm:$0xff]
  %v173 = vmul.f32 %v141, %v157
  %v174 = vmul.f32 %v142, %v158
  %v175 = vmul.f32 %v143, %v159
  %v176 = vmul.f32 %v144, %v160
  %v177 = vmul.f32 %v145, %v161
  %v178 = vmul.f32 %v146, %v162
  %v179 = vmul.f32 %v147, %v163
  %v180 = vmul.f32 %v148, %v164
  %v181 = vmul.f32 %v149, %v165
  %v182 = vmul.f32 %v150, %v166
  %v183 = vmul.f32 %v151, %v167
  %v184 = vmul.f32 %v152, %v168
  %v185 = vmul.f32 %v153, %v169
  %v186 = vmul.f32 %v154, %v170
  %v187 = vmul.f32 %v155, %v171
  %v188 = vmul.f32 %v156, %v172
  %vm189 = vcmask 277504
  %v190 = vsel %vm189, %v173, 0.0
  %191 = vadd.xlane.f32.xlu0 %v190
  %v192 = vpop.xlane.xlu0 %191
  %v193 = vsel %vm189, %v174, 0.0
  %194 = vadd.xlane.f32.xlu0 %v193
  %v195 = vpop.xlane.xlu0 %194
  %v196 = vsel %vm189, %v175, 0.0
  %197 = vadd.xlane.f32.xlu0 %v196
  %v198 = vpop.xlane.xlu0 %197
  %v199 = vsel %vm189, %v176, 0.0
  %200 = vadd.xlane.f32.xlu0 %v199
  %v201 = vpop.xlane.xlu0 %200
  %v202 = vsel %vm189, %v177, 0.0
  %203 = vadd.xlane.f32.xlu0 %v202
  %v204 = vpop.xlane.xlu0 %203
  %v205 = vsel %vm189, %v178, 0.0
  %206 = vadd.xlane.f32.xlu0 %v205
  %v207 = vpop.xlane.xlu0 %206
  %v208 = vsel %vm189, %v179, 0.0
  %209 = vadd.xlane.f32.xlu0 %v208
  %v210 = vpop.xlane.xlu0 %209
  %v211 = vsel %vm189, %v180, 0.0
  %212 = vadd.xlane.f32.xlu0 %v211
  %v213 = vpop.xlane.xlu0 %212
  %v214 = vsel %vm189, %v181, 0.0
  %215 = vadd.xlane.f32.xlu0 %v214
  %v216 = vpop.xlane.xlu0 %215
  %v217 = vsel %vm189, %v182, 0.0
  %218 = vadd.xlane.f32.xlu0 %v217
  %v219 = vpop.xlane.xlu0 %218
  %v220 = vsel %vm189, %v183, 0.0
  %221 = vadd.xlane.f32.xlu0 %v220
  %v222 = vpop.xlane.xlu0 %221
  %v223 = vsel %vm189, %v184, 0.0
  %224 = vadd.xlane.f32.xlu0 %v223
  %v225 = vpop.xlane.xlu0 %224
  %v226 = vsel %vm189, %v185, 0.0
  %227 = vadd.xlane.f32.xlu0 %v226
  %v228 = vpop.xlane.xlu0 %227
  %v229 = vsel %vm189, %v186, 0.0
  %230 = vadd.xlane.f32.xlu0 %v229
  %v231 = vpop.xlane.xlu0 %230
  %v232 = vsel %vm189, %v187, 0.0
  %233 = vadd.xlane.f32.xlu0 %v232
  %v234 = vpop.xlane.xlu0 %233
  %v235 = vsel %vm189, %v188, 0.0
  %236 = vadd.xlane.f32.xlu0 %v235
  %v237 = vpop.xlane.xlu0 %236
  %v238 = vld [vmem:[%s2] sm:$0xff]
  %v239 = vld [vmem:[%s2 + $0x8] sm:$0xff]
  %v240 = vld [vmem:[%s2 + $0x10] sm:$0xff]
  %v241 = vld [vmem:[%s2 + $0x18] sm:$0xff]
  %v242 = vld [vmem:[%s2 + $0x20] sm:$0xff]
  %v243 = vld [vmem:[%s2 + $0x28] sm:$0xff]
  %v244 = vld [vmem:[%s2 + $0x30] sm:$0xff]
  %v245 = vld [vmem:[%s2 + $0x38] sm:$0xff]
  %v246 = vld [vmem:[%s2 + $0x40] sm:$0xff]
  %v247 = vld [vmem:[%s2 + $0x48] sm:$0xff]
  %v248 = vld [vmem:[%s2 + $0x50] sm:$0xff]
  %v249 = vld [vmem:[%s2 + $0x58] sm:$0xff]
  %v250 = vld [vmem:[%s2 + $0x60] sm:$0xff]
  %v251 = vld [vmem:[%s2 + $0x68] sm:$0xff]
  %v252 = vld [vmem:[%s2 + $0x70] sm:$0xff]
  %v253 = vld [vmem:[%s2 + $0x78] sm:$0xff]
  %v254 = vadd.f32 %v238, 1e-10
  %v255 = vadd.f32 %v239, 1e-10
  %v256 = vadd.f32 %v240, 1e-10
  %v257 = vadd.f32 %v241, 1e-10
  %v258 = vadd.f32 %v242, 1e-10
  %v259 = vadd.f32 %v243, 1e-10
  %v260 = vadd.f32 %v244, 1e-10
  %v261 = vadd.f32 %v245, 1e-10
  %v262 = vadd.f32 %v246, 1e-10
  %v263 = vadd.f32 %v247, 1e-10
  %v264 = vadd.f32 %v248, 1e-10
  %v265 = vadd.f32 %v249, 1e-10
  %v266 = vadd.f32 %v250, 1e-10
  %v267 = vadd.f32 %v251, 1e-10
  %v268 = vadd.f32 %v252, 1e-10
  %v269 = vadd.f32 %v253, 1e-10
  %v270 = vlog2.pop %v254
  %v271 = vmul.f32 %v270, 0.6931472
  %v272 = vlog2.pop %v255
  %v273 = vmul.f32 %v272, 0.6931472
  %v274 = vlog2.pop %v256
  %v275 = vmul.f32 %v274, 0.6931472
  %v276 = vlog2.pop %v257
  %v277 = vmul.f32 %v276, 0.6931472
  %v278 = vlog2.pop %v258
  %v279 = vmul.f32 %v278, 0.6931472
  %v280 = vlog2.pop %v259
  %v281 = vmul.f32 %v280, 0.6931472
  %v282 = vlog2.pop %v260
  %v283 = vmul.f32 %v282, 0.6931472
  %v284 = vlog2.pop %v261
  %v285 = vmul.f32 %v284, 0.6931472
  %v286 = vlog2.pop %v262
  %v287 = vmul.f32 %v286, 0.6931472
  %v288 = vlog2.pop %v263
  %v289 = vmul.f32 %v288, 0.6931472
  %v290 = vlog2.pop %v264
  %v291 = vmul.f32 %v290, 0.6931472
  %v292 = vlog2.pop %v265
  %v293 = vmul.f32 %v292, 0.6931472
  %v294 = vlog2.pop %v266
  %v295 = vmul.f32 %v294, 0.6931472
  %v296 = vlog2.pop %v267
  %v297 = vmul.f32 %v296, 0.6931472
  %v298 = vlog2.pop %v268
  %v299 = vmul.f32 %v298, 0.6931472
  %v300 = vlog2.pop %v269
  %v301 = vmul.f32 %v300, 0.6931472
  %v302 = vsub.f32 %v192, %v271
  %v303 = vsub.f32 %v195, %v273
  %v304 = vsub.f32 %v198, %v275
  %v305 = vsub.f32 %v201, %v277
  %v306 = vsub.f32 %v204, %v279
  %v307 = vsub.f32 %v207, %v281
  %v308 = vsub.f32 %v210, %v283
  %v309 = vsub.f32 %v213, %v285
  %v310 = vsub.f32 %v216, %v287
  %v311 = vsub.f32 %v219, %v289
  %v312 = vsub.f32 %v222, %v291
  %v313 = vsub.f32 %v225, %v293
  %v314 = vsub.f32 %v228, %v295
  %v315 = vsub.f32 %v231, %v297
  %v316 = vsub.f32 %v234, %v299
  %v317 = vsub.f32 %v237, %v301
  %v318 = vmul.f32 %v302, %v302
  %v319 = vmul.f32 %v303, %v303
  %v320 = vmul.f32 %v304, %v304
  %v321 = vmul.f32 %v305, %v305
  %v322 = vmul.f32 %v306, %v306
  %v323 = vmul.f32 %v307, %v307
  %v324 = vmul.f32 %v308, %v308
  %v325 = vmul.f32 %v309, %v309
  %v326 = vmul.f32 %v310, %v310
  %v327 = vmul.f32 %v311, %v311
  %v328 = vmul.f32 %v312, %v312
  %v329 = vmul.f32 %v313, %v313
  %v330 = vmul.f32 %v314, %v314
  %v331 = vmul.f32 %v315, %v315
  %v332 = vmul.f32 %v316, %v316
  %v333 = vmul.f32 %v317, %v317
  %vm334 = vcmask 7168
  %335 = vst.msk [vmem:[%s5] sm:$0xff] %vm334, %v318
  %336 = vst.msk [vmem:[%s5 + $0x8] sm:$0xff] %vm334, %v319
  %337 = vst.msk [vmem:[%s5 + $0x10] sm:$0xff] %vm334, %v320
  %338 = vst.msk [vmem:[%s5 + $0x18] sm:$0xff] %vm334, %v321
  %339 = vst.msk [vmem:[%s5 + $0x20] sm:$0xff] %vm334, %v322
  %340 = vst.msk [vmem:[%s5 + $0x28] sm:$0xff] %vm334, %v323
  %341 = vst.msk [vmem:[%s5 + $0x30] sm:$0xff] %vm334, %v324
  %342 = vst.msk [vmem:[%s5 + $0x38] sm:$0xff] %vm334, %v325
  %343 = vst.msk [vmem:[%s5 + $0x40] sm:$0xff] %vm334, %v326
  %344 = vst.msk [vmem:[%s5 + $0x48] sm:$0xff] %vm334, %v327
  %345 = vst.msk [vmem:[%s5 + $0x50] sm:$0xff] %vm334, %v328
  %346 = vst.msk [vmem:[%s5 + $0x58] sm:$0xff] %vm334, %v329
  %347 = vst.msk [vmem:[%s5 + $0x60] sm:$0xff] %vm334, %v330
  %348 = vst.msk [vmem:[%s5 + $0x68] sm:$0xff] %vm334, %v331
  %349 = vst.msk [vmem:[%s5 + $0x70] sm:$0xff] %vm334, %v332
  %350 = vst.msk [vmem:[%s5 + $0x78] sm:$0xff] %vm334, %v333
  // Predicated region
  $region80: #{glove_forward_aug.1} parent=0 // pred_check
    _
  $region81: #{glove_forward_aug.1} parent=0 // pred_check_branch
    %352 = sbr.rel (0) target = $region83
  $region82: #{glove_forward_aug.1} parent=0 // pred_region
    _
  $region83: #{glove_forward_aug.1} parent=0 // pred_fallthru
    _
  // Predicated region
  $region84: #{glove_forward_aug.1} parent=0 // pred_check
    _
  $region85: #{glove_forward_aug.1} parent=0 // pred_check_branch
    %354 = sbr.rel (0) target = $region87
  $region86: #{glove_forward_aug.1} parent=0 // pred_region
    _
  $region87: #{glove_forward_aug.1} parent=0 // pred_fallthru
    _
  %355 = vsyncmov [#allocation4]
  %s356 = vpop.sfrf %355
  %p357 = scmp.eq.s32.totalorder %s356, 0
  %p358 = pneg %p357
  %360 = shalt.err (%p358)
  %s361 = scalar_lea.sflag [#allocation4], 1
  %362 = vsyncmov %s361
  %s363 = vpop.sfrf %362
  %p364 = scmp.eq.s32.totalorder %s363, 0
  %p365 = pneg %p364
  %367 = shalt.err (%p365)

</llo_original>
